<compile_context>
chip_gen: v6e
topology: v6e:2x2x1
jax: 0.10.0
libtpu: 0.0.40
codegen_flags: <defaults>
</compile_context>

<pallas_src>
import functools

import jax
import jax.numpy as jnp
from jax.experimental import pallas as pl
from jax.experimental.pallas import tpu as pltpu

HIDDEN = 128     # per-head hidden width from the PyTorch module
LANES = 128      # TPU lane width / padded output width
NEG_FILL = -1e30  # "minus infinity" baked into padding-lane biases (no inf -> no NaN risk)


def _round_up(x, m):
    return (x + m - 1) // m * m


def _cdiv(a, b):
    return -(-a // b)


@functools.lru_cache(maxsize=None)
def _tpu_defaults():
    """(default block_b, vmem_limit_bytes) per TPU generation."""
    try:
        vmem = int(pltpu.get_tpu_info().vmem_capacity_bytes)
    except Exception:
        vmem = 64 * 1024 * 1024
    if vmem >= 100 * 1024 * 1024:          # v5e / v6e: 128 MiB VMEM
        return 8192, 64 * 1024 * 1024
    return 4096, 32 * 1024 * 1024           # v7x: 64 MiB VMEM per TC


# ---------------------------------------------------------------------------
# Kernel
# ---------------------------------------------------------------------------
def actor_critic_kernel(x_ref, w1_ref, w2_ref, out_ref, *, sd_pad, action_dim, fold_bias1):
    """One batch tile of the fused actor+critic forward.

    x_ref   : (TB, sd_pad)  zero-padded state tile; if fold_bias1, column `state_dim` is 1.0
    w1_ref  : fold_bias1:  (sd_pad, 2H)   rows = [Wa1|Wc1] with [ba1|bc1] at the bias row
              else:        (sd_pad+8, 2H) rows [0:sd_pad)=[Wa1|Wc1], row sd_pad=[ba1|bc1]
    w2_ref  : (2H+8, 128)   rows [0:2H)=blockdiag(Wa2,Wc2); row 2H = [ba2 | bc2 | -1e30...]
    out_ref : (TB, 128)     lanes [0:A)=softmax probs, lane A=value, padding lanes = 0
    """
    x = x_ref[...]                                              # (TB, SDp) f32

    # ---- fused layer 1 (both heads): one N=256 MXU pass (+ optional bias add) ----
    if fold_bias1:
        h = jnp.dot(x, w1_ref[...], preferred_element_type=jnp.float32)
    else:
        w1 = w1_ref[0:sd_pad, :]                                # (SDp, 2H)
        b1 = w1_ref[sd_pad:sd_pad + 1, :]                       # (1, 2H)
        h = jnp.dot(x, w1, preferred_element_type=jnp.float32) + b1
    h = jnp.maximum(h, 0.0)                                     # [relu(actor) | relu(critic)]

    # ---- fused layer 2 (both heads): one N=128 (lane-padded) MXU pass ----
    w2 = w2_ref[0:2 * HIDDEN, :]                                # (2H, 128) block-diagonal
    b2 = w2_ref[2 * HIDDEN:2 * HIDDEN + 1, :]                   # (1, 128); padding lanes -1e30
    y = jnp.dot(h, w2, preferred_element_type=jnp.float32) + b2  # (TB, 128)
    # lanes [0,A): actor logits ; lane A: critic value ; lanes > A: ~-1e30 (softmax-dead)

    # ---- stable softmax over actor lanes; only the value lane needs masking ----
    lane = jax.lax.broadcasted_iota(jnp.int32, y.shape, 1)
    is_value = lane == action_dim                               # computed once, reused twice
    logits = jnp.where(is_value, jnp.float32(NEG_FILL), y)
    m = jnp.max(logits, axis=-1, keepdims=True)
    e = jnp.exp(logits - m)                                     # dead lanes underflow to 0
    denom = jnp.sum(e, axis=-1, keepdims=True)
    r = pl.reciprocal(denom, approx=True)                       # EUP slot (off the VALU path)
    r = r * (2.0 - denom * r)                                   # one Newton step -> ~exact
    probs = e * r

    out_ref[...] = jnp.where(is_value, y, probs).astype(out_ref.dtype)


# ---------------------------------------------------------------------------
# Parameter packing (once per weight update, NOT per forward step)
# ---------------------------------------------------------------------------
def prepare_params(params):
    """Pack PyTorch-layout params (W: (in,out), b: (1,out)) into two lane-padded f32 slabs."""
    state_dim = params["wa1"].shape[0]
    action_dim = params["wa2"].shape[1]
    assert action_dim < LANES, "need a spare lane for the critic value"

    sd_pad = _round_up(max(state_dim, 8), 8)
    fold_bias1 = sd_pad > state_dim           # a free padded feature lane exists -> fold bias

    if fold_bias1:
        slab1 = jnp.zeros((sd_pad, 2 * HIDDEN), jnp.float32)
        slab1 = slab1.at[:state_dim, :HIDDEN].set(params["wa1"])
        slab1 = slab1.at[:state_dim, HIDDEN:].set(params["wc1"])
        slab1 = slab1.at[state_dim, :HIDDEN].set(params["ba1"][0])
        slab1 = slab1.at[state_dim, HIDDEN:].set(params["bc1"][0])
    else:
        slab1 = jnp.zeros((sd_pad + 8, 2 * HIDDEN), jnp.float32)
        slab1 = slab1.at[:state_dim, :HIDDEN].set(params["wa1"])
        slab1 = slab1.at[:state_dim, HIDDEN:].set(params["wc1"])
        slab1 = slab1.at[sd_pad, :HIDDEN].set(params["ba1"][0])
        slab1 = slab1.at[sd_pad, HIDDEN:].set(params["bc1"][0])

    # slab2: rows [0:2H) = blockdiag(Wa2, Wc2); bias row has -1e30 on padding lanes so the
    # in-kernel softmax mask only has to handle the value lane.
    slab2 = jnp.zeros((2 * HIDDEN + 8, LANES), jnp.float32)
    slab2 = slab2.at[:HIDDEN, :action_dim].set(params["wa2"])
    slab2 = slab2.at[HIDDEN:2 * HIDDEN, action_dim:action_dim + 1].set(params["wc2"])
    bias_row = jnp.full((LANES,), NEG_FILL, jnp.float32)
    bias_row = bias_row.at[:action_dim].set(params["ba2"][0])
    bias_row = bias_row.at[action_dim].set(params["bc2"][0, 0])
    slab2 = slab2.at[2 * HIDDEN].set(bias_row)

    return slab1, slab2


# ---------------------------------------------------------------------------
# Forward wrappers
# ---------------------------------------------------------------------------
def actor_critic_packed(state, slab1, slab2, *, action_dim, block_b=None,
                        out_dtype=jnp.bfloat16):
    """Returns the packed (b_pad, 128) output slab (probs in lanes [0,A), value in lane A)."""
    B, state_dim = state.shape
    sd_pad = _round_up(max(state_dim, 8), 8)
    fold_bias1 = sd_pad > state_dim
    expected_h = sd_pad if fold_bias1 else sd_pad + 8
    assert slab1.shape == (expected_h, 2 * HIDDEN), "slab1 does not match this state_dim"
    assert slab2.shape == (2 * HIDDEN + 8, LANES)

    default_block_b, vmem_limit = _tpu_defaults()
    if block_b is None:
        block_b = default_block_b

    # Cap the batch tile so tile-scaled VMEM (x/out double-buffers, h, epilogue temps)
    # stays well inside the scoped limit on every generation.
    out_bytes = jnp.dtype(out_dtype).itemsize
    per_row = 2 * sd_pad * 4 + 2 * LANES * out_bytes + 2 * HIDDEN * 4 + 4 * LANES * 4
    cap = max(8, (int(vmem_limit * 0.5) // per_row) // 8 * 8)
    block_b = max(8, min(block_b, cap))

    # Tile policy: bounded padding waste; a few extra tiles for large B so the "parallel"
    # grid axis can split across the two TensorCores on v7x.
    n_tiles = _cdiv(B, block_b)
    if B >= 4096:
        n_tiles = max(n_tiles, 4)
    elif B >= 2048:
        n_tiles = max(n_tiles, 2)
    tb = _round_up(_cdiv(B, n_tiles), 8)
    b_pad = tb * n_tiles

    # Input prep: zero-copy fast path when already aligned; otherwise one jnp.pad.
    state = state.astype(jnp.float32)
    if fold_bias1:
        x = jnp.pad(state, ((0, b_pad - B), (0, sd_pad - state_dim)))
        x = x.at[:, state_dim].set(1.0)          # bias column -> layer-1 bias rides the MXU
    elif b_pad == B:
        x = state                                 # no wrapper-side copy at all
    else:
        x = jnp.pad(state, ((0, b_pad - B), (0, 0)))

    kernel = functools.partial(actor_critic_kernel, sd_pad=sd_pad,
                               action_dim=action_dim, fold_bias1=fold_bias1)

    return pl.pallas_call(
        kernel,
        out_shape=jax.ShapeDtypeStruct((b_pad, LANES), out_dtype),
        grid_spec=pltpu.PrefetchScalarGridSpec(
            num_scalar_prefetch=0,
            grid=(n_tiles,),
            in_specs=[
                pl.BlockSpec((tb, sd_pad), lambda i: (i, 0)),      # state: tiled over batch
                pl.BlockSpec(slab1.shape, lambda i: (0, 0)),       # weights: resident
                pl.BlockSpec(slab2.shape, lambda i: (0, 0)),
            ],
            out_specs=pl.BlockSpec((tb, LANES), lambda i: (i, 0)),  # lane-dense output slab
        ),
        compiler_params=pltpu.CompilerParams(
            dimension_semantics=("parallel",),       # megacore split over batch on v7x
            vmem_limit_bytes=vmem_limit,
        ),
    )(x, slab1, slab2)


def unpack_output(out_slab, batch, action_dim):
    """Slice probs/value out of the packed slab. Call this inside the consumer's jit so XLA
    fuses it instead of re-reading the whole slab from HBM."""
    probs = out_slab[:batch, :action_dim].astype(jnp.float32)
    value = out_slab[:batch, action_dim:action_dim + 1].astype(jnp.float32)
    return probs, value


def actor_critic_forward(state, slab1, slab2, *, action_dim, block_b=None,
                         out_dtype=jnp.bfloat16):
    """Convenience wrapper: (action_probs (B, A), state_value (B, 1))."""
    out = actor_critic_packed(state, slab1, slab2, action_dim=action_dim,
                              block_b=block_b, out_dtype=out_dtype)
    return unpack_output(out, state.shape[0], action_dim)


# ---------------------------------------------------------------------------
# Reference / init / test
# ---------------------------------------------------------------------------
def init_params(key, state_dim, action_dim, hidden=HIDDEN):
    """Deterministic init mimicking PyTorch Linear default: U(-1/sqrt(in), 1/sqrt(in))."""
    ks = jax.random.split(key, 8)

    def lin(kw, kb, fan_in, fan_out):
        bound = 1.0 / jnp.sqrt(jnp.float32(fan_in))
        w = jax.random.uniform(kw, (fan_in, fan_out), jnp.float32, -bound, bound)
        b = jax.random.uniform(kb, (1, fan_out), jnp.float32, -bound, bound)
        return w, b

    wa1, ba1 = lin(ks[0], ks[1], state_dim, hidden)
    wa2, ba2 = lin(ks[2], ks[3], hidden, action_dim)
    wc1, bc1 = lin(ks[4], ks[5], state_dim, hidden)
    wc2, bc2 = lin(ks[6], ks[7], hidden, 1)
    return dict(wa1=wa1, ba1=ba1, wa2=wa2, ba2=ba2,
                wc1=wc1, bc1=bc1, wc2=wc2, bc2=bc2)


def _ref(x, p):
    ha = jnp.maximum(x @ p["wa1"] + p["ba1"], 0.0)
    pr = jax.nn.softmax(ha @ p["wa2"] + p["ba2"], axis=-1)
    hc = jnp.maximum(x @ p["wc1"] + p["bc1"], 0.0)
    v = hc @ p["wc2"] + p["bc2"]
    return pr, v


if __name__ == "__main__":
    key = jax.random.PRNGKey(0)
    k_state, k_params, k_state2, k_params2 = jax.random.split(key, 4)

    # --- case 1: aligned state_dim (16) -> zero-copy input fast path, single grid step ---
    B, state_dim, action_dim = 8, 16, 4
    state = jax.random.normal(k_state, (B, state_dim), jnp.float32)
    params = init_params(k_params, state_dim, action_dim)
    slab1, slab2 = prepare_params(params)             # once per weight update

    fwd = jax.jit(functools.partial(actor_critic_forward, action_dim=action_dim))
    probs, value = fwd(state, slab1, slab2)
    jax.block_until_ready((probs, value))

    pr_ref, v_ref = _ref(state, params)
    assert probs.shape == (B, action_dim) and value.shape == (B, 1)
    # bf16 output slab -> ~4e-3 rounding on probs/value; Newton step keeps sums ~1
    assert jnp.allclose(probs, pr_ref, atol=1e-2)
    assert jnp.allclose(jnp.sum(probs, axis=-1), 1.0, atol=2e-2)
    assert jnp.allclose(value, v_ref, atol=2e-2, rtol=2e-2)

    # --- case 2: unaligned state_dim (5) -> bias-folded path, multi-tile batch grid ---
    B2, state_dim2, action_dim2 = 40, 5, 6
    state2 = jax.random.normal(k_state2, (B2, state_dim2), jnp.float32)
    params2 = init_params(k_params2, state_dim2, action_dim2)
    slab1b, slab2b = prepare_params(params2)

    fwd2 = jax.jit(functools.partial(actor_critic_forward, action_dim=action_dim2, block_b=16))
    probs2, value2 = fwd2(state2, slab1b, slab2b)     # grid of 3 batch tiles
    jax.block_until_ready((probs2, value2))

    pr_ref2, v_ref2 = _ref(state2, params2)
    assert probs2.shape == (B2, action_dim2) and value2.shape == (B2, 1)
    assert jnp.allclose(probs2, pr_ref2, atol=1e-2)
    assert jnp.allclose(jnp.sum(probs2, axis=-1), 1.0, atol=2e-2)
    assert jnp.allclose(value2, v_ref2, atol=2e-2, rtol=2e-2)

    print("KERNEL_OK")
</pallas_src>

<mosaic_0001>
module attributes {stable_mosaic.version = 11 : i64} {
  func.func @actor_critic_kernel(%arg0: i32, %arg1: memref<8x16xf32, #tpu.memory_space<vmem>>, %arg2: memref<24x256xf32, #tpu.memory_space<vmem>>, %arg3: memref<264x128xf32, #tpu.memory_space<vmem>>, %arg4: memref<8x128xbf16, #tpu.memory_space<vmem>>) attributes {dimension_semantics = [#tpu.dimension_semantics<parallel>], iteration_bounds = array<i64: 1>, scalar_prefetch = 0 : i64, scratch_operands = 0 : i64, tpu.core_type = #tpu.core_type<tc>, window_params = [{transform_indices = @transform_0, window_bounds = array<i64: 8, 16>}, {pipeline_mode = #tpu.pipeline_mode<synchronous>, transform_indices = @transform_1, window_bounds = array<i64: 24, 256>}, {pipeline_mode = #tpu.pipeline_mode<synchronous>, transform_indices = @transform_2, window_bounds = array<i64: 264, 128>}, {transform_indices = @transform_3, window_bounds = array<i64: 8, 128>}]} {
    %c0 = arith.constant 0 : index
    %c0_0 = arith.constant 0 : index
    %0 = vector.load %arg1[%c0, %c0_0] : memref<8x16xf32, #tpu.memory_space<vmem>>, vector<8x16xf32>
    %c0_1 = arith.constant 0 : index
    %c0_2 = arith.constant 0 : index
    %1 = vector.load %arg2[%c0_1, %c0_2] : memref<24x256xf32, #tpu.memory_space<vmem>>, vector<16x256xf32>
    %c16 = arith.constant 16 : index
    %c0_3 = arith.constant 0 : index
    %2 = vector.load %arg2[%c16, %c0_3] : memref<24x256xf32, #tpu.memory_space<vmem>>, vector<1x256xf32>
    %cst = arith.constant dense<0.000000e+00> : vector<8x256xf32>
    %3 = tpu.matmul %0, %1, %cst {dimension_numbers = #tpu.dot_dimension_numbers<[1], [0], [0], [1], [0, 0, 1, 1], [], []>} : vector<8x16xf32>, vector<16x256xf32>, vector<8x256xf32> -> vector<8x256xf32>
    %4 = vector.broadcast %2 : vector<1x256xf32> to vector<8x256xf32>
    %5 = arith.addf %3, %4 : vector<8x256xf32>
    %cst_4 = arith.constant 0.000000e+00 : f32
    %6 = vector.broadcast %cst_4 : f32 to vector<8x256xf32>
    %7 = arith.maximumf %5, %6 : vector<8x256xf32>
    %c0_5 = arith.constant 0 : index
    %c0_6 = arith.constant 0 : index
    %8 = vector.load %arg3[%c0_5, %c0_6] : memref<264x128xf32, #tpu.memory_space<vmem>>, vector<256x128xf32>
    %c256 = arith.constant 256 : index
    %c0_7 = arith.constant 0 : index
    %9 = vector.load %arg3[%c256, %c0_7] : memref<264x128xf32, #tpu.memory_space<vmem>>, vector<1x128xf32>
    %cst_8 = arith.constant dense<0.000000e+00> : vector<8x128xf32>
    %10 = tpu.matmul %7, %8, %cst_8 {dimension_numbers = #tpu.dot_dimension_numbers<[1], [0], [0], [1], [0, 0, 1, 1], [], []>} : vector<8x256xf32>, vector<256x128xf32>, vector<8x128xf32> -> vector<8x128xf32>
    %11 = vector.broadcast %9 : vector<1x128xf32> to vector<8x128xf32>
    %12 = arith.addf %10, %11 : vector<8x128xf32>
    %13 = tpu.iota {dimensions = array<i32: 1>} : vector<8x128xi32>
    %c4_i32 = arith.constant 4 : i32
    %14 = vector.broadcast %c4_i32 : i32 to vector<8x128xi32>
    %15 = arith.cmpi eq, %13, %14 : vector<8x128xi32>
    %cst_9 = arith.constant -1.000000e+30 : f32
    %16 = vector.broadcast %cst_9 : f32 to vector<8x128xf32>
    %17 = arith.select %15, %16, %12 : vector<8x128xi1>, vector<8x128xf32>
    %cst_10 = arith.constant dense<0xFF800000> : vector<8xf32>
    %18 = vector.multi_reduction <maximumf>, %17, %cst_10 [1] : vector<8x128xf32> to vector<8xf32>
    %19 = vector.shape_cast %18 : vector<8xf32> to vector<8x1xf32>
    %20 = vector.broadcast %19 : vector<8x1xf32> to vector<8x128xf32>
    %21 = arith.subf %17, %20 : vector<8x128xf32>
    %22 = math.exp %21 : vector<8x128xf32>
    %cst_11 = arith.constant dense<0.000000e+00> : vector<8xf32>
    %23 = vector.multi_reduction <add>, %22, %cst_11 [1] : vector<8x128xf32> to vector<8xf32>
    %24 = vector.shape_cast %23 : vector<8xf32> to vector<8x1xf32>
    %25 = tpu.reciprocal %24 {approx = true} : vector<8x1xf32> -> vector<8x1xf32>
    %26 = arith.mulf %24, %25 : vector<8x1xf32>
    %cst_12 = arith.constant 2.000000e+00 : f32
    %27 = vector.broadcast %cst_12 : f32 to vector<8x1xf32>
    %28 = arith.subf %27, %26 : vector<8x1xf32>
    %29 = arith.mulf %25, %28 : vector<8x1xf32>
    %30 = vector.broadcast %29 : vector<8x1xf32> to vector<8x128xf32>
    %31 = arith.mulf %22, %30 : vector<8x128xf32>
    %32 = arith.select %15, %12, %31 : vector<8x128xi1>, vector<8x128xf32>
    %33 = arith.truncf %32 : vector<8x128xf32> to vector<8x128xbf16>
    %c0_13 = arith.constant 0 : index
    %c0_14 = arith.constant 0 : index
    %34 = vector.load %arg4[%c0_13, %c0_14] : memref<8x128xbf16, #tpu.memory_space<vmem>>, vector<8x128xbf16>
    tpu.vector_store %arg4[%c0_13, %c0_14], %33 {strides = array<i32>} : memref<8x128xbf16, #tpu.memory_space<vmem>>, vector<8x128xbf16>,
    return
  }
  func.func @transform_0(%arg0: i32) -> (i32, i32) {
    %c0_i32 = arith.constant 0 : i32
    %c0_i32_0 = arith.constant 0 : i32
    return %arg0, %c0_i32 : i32, i32
  }
  func.func @transform_1(%arg0: i32) -> (i32, i32) {
    %c0_i32 = arith.constant 0 : i32
    %c0_i32_0 = arith.constant 0 : i32
    %c0_i32_1 = arith.constant 0 : i32
    return %c0_i32, %c0_i32_0 : i32, i32
  }
  func.func @transform_2(%arg0: i32) -> (i32, i32) {
    %c0_i32 = arith.constant 0 : i32
    %c0_i32_0 = arith.constant 0 : i32
    %c0_i32_1 = arith.constant 0 : i32
    return %c0_i32, %c0_i32_0 : i32, i32
  }
  func.func @transform_3(%arg0: i32) -> (i32, i32) {
    %c0_i32 = arith.constant 0 : i32
    %c0_i32_0 = arith.constant 0 : i32
    return %arg0, %c0_i32 : i32, i32
  }
}

</mosaic_0001>

<llo_original>
// kernel: actor_critic_forward.1
$region0: #{actor_critic_forward.1}
  #allocation0 [shape = 'u32[]', space=smem, size = 0x4, offset = 0x4, fixed_abs, tag = 'smem constant byte address 0x4 - core index']
  #allocation1 [shape = 'u32[144,128]{1,0:T(1,128)}', space=vmem, size = 0x12000, scoped, tag = 'internal scratch']
  %s0 = inlined_call_operand.hbm [shape: f32[8,16], index: 0, kind: input, shape index: {}]
  %s1 = inlined_call_operand.hbm [shape: f32[24,256], index: 1, kind: input, shape index: {}]
  %s2 = inlined_call_operand.hbm [shape: f32[264,128], index: 2, kind: input, shape index: {}]
  %s3 = inlined_call_operand.vmem [shape: bf16[8,128], index: 3, kind: output, shape index: {}]
  %s4 = sld [smem:[#allocation0]]
  $region34: #{actor_critic_forward.1} parent=0
    _
  %s6 = ssub.s32 1, %s4
  %s7 = scalar_select 0, %s6, %s4
  $region1: #{actor_critic_forward.1} parent=0
    #allocation2 [shape = 'u8[4096]{0}', space=vmem, size = 0x1000, scoped, tag = 'input window, operand 0, single buffered']
    #allocation3 [shape = 's32[1]{0}', space=sflag, size = 0x4, scoped, tag = 'scoped memory for actor_critic_forward.1']
    #allocation4 [shape = 'u8[24576]{0}', space=vmem, size = 0x6000, scoped, tag = 'input window, operand 1, single buffered']
    #allocation5 [shape = 's32[1]{0}', space=sflag, size = 0x4, scoped, tag = 'scoped memory for actor_critic_forward.1']
    #allocation6 [shape = 'u8[135168]{0}', space=vmem, size = 0x21000, scoped, tag = 'input window, operand 2, single buffered']
    %8 = vsyncpa [#allocation3], 0
    %9 = vsyncpa [#allocation5], 0
    // Predicated region
    $region2: #{actor_critic_forward.1} parent=1 // pred_check
      _
    $region3: #{actor_critic_forward.1} parent=1 // pred_check_branch
      %11 = sbr.rel (0) target = $region5
    $region4: #{actor_critic_forward.1} parent=1 // pred_region
      %s13 = ssub.s32 128, 128
      %14 = vsyncadd [#allocation3], %s13
      %s16 = sshll.u32 [#allocation2], 4
      %s17 = int_to_ptr.vmem [resolvable:$true] %s16
      %19 = dma.hbm_to_vmem [thread:$0]  %s0, 128, %s17, [#allocation3]
    $region5: #{actor_critic_forward.1} parent=1 // pred_fallthru
      _
    // Predicated region
    $region6: #{actor_critic_forward.1} parent=1 // pred_check
      _
    $region7: #{actor_critic_forward.1} parent=1 // pred_check_branch
      %21 = sbr.rel (0) target = $region9
    $region8: #{actor_critic_forward.1} parent=1 // pred_region
      %s23 = ssub.s32 768, 768
      %24 = vsyncadd [#allocation5], %s23
      %s25 = sshll.u32 [#allocation4], 4
      %s26 = int_to_ptr.vmem [resolvable:$true] %s25
      %31 = dma.hbm_to_vmem [thread:$0]  %s1, 768, %s26, [#allocation5], 256, 256, 16
    $region9: #{actor_critic_forward.1} parent=1 // pred_fallthru
      _
    // Predicated region
    $region10: #{actor_critic_forward.1} parent=1 // pred_check
      _
    $region11: #{actor_critic_forward.1} parent=1 // pred_check_branch
      %33 = sbr.rel (0) target = $region13
    $region12: #{actor_critic_forward.1} parent=1 // pred_region
      %s35 = ssub.s32 4224, 4224
      %36 = vsyncadd [#allocation5], %s35
      %s37 = sshll.u32 [#allocation6], 4
      %s38 = int_to_ptr.vmem [resolvable:$true] %s37
      %43 = dma.hbm_to_vmem [thread:$0]  %s2, 4224, %s38, [#allocation5], 128, 128, 8
    $region13: #{actor_critic_forward.1} parent=1 // pred_fallthru
      _
    // Predicated region
    $region14: #{actor_critic_forward.1} parent=1 // pred_check
      _
    $region15: #{actor_critic_forward.1} parent=1 // pred_check_branch
      %45 = sbr.rel (0) target = $region17
    $region16: #{actor_critic_forward.1} parent=1 // pred_region
      %46 = dma.done [#allocation3], 128
    $region17: #{actor_critic_forward.1} parent=1 // pred_fallthru
      _
    // Predicated region
    $region18: #{actor_critic_forward.1} parent=1 // pred_check
      _
    $region19: #{actor_critic_forward.1} parent=1 // pred_check_branch
      %48 = sbr.rel (0) target = $region21
    $region20: #{actor_critic_forward.1} parent=1 // pred_region
      %49 = dma.done [#allocation5], 768
    $region21: #{actor_critic_forward.1} parent=1 // pred_fallthru
      _
    // Predicated region
    $region22: #{actor_critic_forward.1} parent=1 // pred_check
      _
    $region23: #{actor_critic_forward.1} parent=1 // pred_check_branch
      %51 = sbr.rel (0) target = $region25
    $region24: #{actor_critic_forward.1} parent=1 // pred_region
      %52 = dma.done [#allocation5], 4224
    $region25: #{actor_critic_forward.1} parent=1 // pred_fallthru
      _
    %v53 = vld [vmem:[#allocation2] sm:$0xff]
    %v54 = vld [vmem:[#allocation4] sm:$0xff]
    %v55 = vld [vmem:[#allocation4 + $0x8] sm:$0xff]
    %v56 = vld [vmem:[#allocation4 + $0x10] sm:$0xff]
    %v57 = vld [vmem:[#allocation4 + $0x18] sm:$0xff]
    %s58 = scalar_lea.vmem [#allocation4], 32
    %v59 = vld [vmem:[%s58] ss:$8 sm:$0x3]
    %v61 = vlaneseq
    %v62 = vshrl.u32 %v61, 7
    %v63 = vsub.s32 0, %v62
    %v64 = vrot.slane %v59, %v63
    %v65 = vlaneseq
    %v66 = vshrl.u32 %v65, 7
    %v67 = vsub.s32 1, %v66
    %v68 = vrot.slane %v59, %v67
    %vm71 = vcmask 130048
    %v73 = vsel %vm71, %v53, 0
    %75 = vmatprep.subr.mxu0 0.0
    %76 = vmatpush1.msra.mxu0 0.0
    %77 = vmatprep.subr.mxu0 0.0
    %78 = vmatpush1.msra.mxu0 0.0
    %79 = vmatprep.subr.mxu0 0.0
    %80 = vmatpush1.msra.mxu0 0.0
    %81 = vmatprep.subr.mxu0 0.0
    %82 = vmatpush1.msra.mxu0 0.0
    %83 = vmatprep.subr.mxu0 0.0
    %84 = vmatpush1.msra.mxu0 0.0
    %85 = vmatprep.subr.mxu0 0.0
    %86 = vmatpush1.msra.mxu0 0.0
    %87 = vmatprep.subr.mxu0 0.0
    %88 = vmatpush1.msra.mxu0 0.0
    %89 = vmatprep.subr.mxu0 0.0
    %90 = vmatpush1.msra.mxu0 0.0
    %91 = vmatprep.subr.mxu0 0.0
    %92 = vmatpush1.msra.mxu0 0.0
    %93 = vmatprep.subr.mxu0 0.0
    %94 = vmatpush1.msra.mxu0 0.0
    %95 = vmatprep.subr.mxu0 0.0
    %96 = vmatpush1.msra.mxu0 0.0
    %97 = vmatprep.subr.mxu0 0.0
    %98 = vmatpush1.msra.mxu0 0.0
    %99 = vmatprep.subr.mxu0 0.0
    %100 = vmatpush1.msra.mxu0 0.0
    %101 = vmatprep.subr.mxu0 0.0
    %102 = vmatpush1.msra.mxu0 0.0
    %103 = vmatprep.subr.mxu0 %v57
    %104 = vmatpush1.msra.mxu0 %v56
    %105 = vmatprep.subr.mxu0 %v55
    %106 = vmatpush1.msra.mxu0 %v54
    %107 = vmatprep.subr.mxu0 0.0
    %108 = vmatpush2.msra.mxu0 0.0
    %109 = vmatprep.subr.mxu0 0.0
    %110 = vmatpush2.msra.mxu0 0.0
    %111 = vmatprep.subr.mxu0 0.0
    %112 = vmatpush2.msra.mxu0 0.0
    %113 = vmatprep.subr.mxu0 0.0
    %114 = vmatpush2.msra.mxu0 0.0
    %115 = vmatprep.subr.mxu0 0.0
    %116 = vmatpush2.msra.mxu0 0.0
    %117 = vmatprep.subr.mxu0 0.0
    %118 = vmatpush2.msra.mxu0 0.0
    %119 = vmatprep.subr.mxu0 0.0
    %120 = vmatpush2.msra.mxu0 0.0
    %121 = vmatprep.subr.mxu0 0.0
    %122 = vmatpush2.msra.mxu0 0.0
    %123 = vmatprep.subr.mxu0 0.0
    %124 = vmatpush2.msra.mxu0 0.0
    %125 = vmatprep.subr.mxu0 0.0
    %126 = vmatpush2.msra.mxu0 0.0
    %127 = vmatprep.subr.mxu0 0.0
    %128 = vmatpush2.msra.mxu0 0.0
    %129 = vmatprep.subr.mxu0 0.0
    %130 = vmatpush2.msra.mxu0 0.0
    %131 = vmatprep.subr.mxu0 0.0
    %132 = vmatpush2.msra.mxu0 0.0
    %133 = vmatprep.subr.mxu0 0.0
    %134 = vmatpush2.msra.mxu0 0.0
    %135 = vmatprep.subr.mxu0 0.0
    %136 = vmatpush2.msra.mxu0 0.0
    %137 = vmatprep.subr.mxu0 0.0
    %138 = vmatpush2.msra.mxu0 0.0
    %139 = vmatprep.mubr.f32.mxu0 0.0
    %140 = vmatmul.mubr.f32.gmra.mxu0 %v73
    %v141 = vpop.f32.mrf.mxu0
    %v142 = vadd.f32 %v64, %v141
    %v143 = vpop.f32.mrf.mxu0
    %v144 = vadd.f32 %v68, %v143
    %145 = vdwg.mxu0
    %v146 = vmax.f32 %v142, 0.0
    %v147 = vmax.f32 %v144, 0.0
    %v148 = vld [vmem:[#allocation6] sm:$0xff]
    %v149 = vld [vmem:[#allocation6 + $0x8] sm:$0xff]
    %v150 = vld [vmem:[#allocation6 + $0x10] sm:$0xff]
    %v151 = vld [vmem:[#allocation6 + $0x18] sm:$0xff]
    %v152 = vld [vmem:[#allocation6 + $0x20] sm:$0xff]
    %v153 = vld [vmem:[#allocation6 + $0x28] sm:$0xff]
    %v154 = vld [vmem:[#allocation6 + $0x30] sm:$0xff]
    %v155 = vld [vmem:[#allocation6 + $0x38] sm:$0xff]
    %v156 = vld [vmem:[#allocation6 + $0x40] sm:$0xff]
    %v157 = vld [vmem:[#allocation6 + $0x48] sm:$0xff]
    %v158 = vld [vmem:[#allocation6 + $0x50] sm:$0xff]
    %v159 = vld [vmem:[#allocation6 + $0x58] sm:$0xff]
    %v160 = vld [vmem:[#allocation6 + $0x60] sm:$0xff]
    %v161 = vld [vmem:[#allocation6 + $0x68] sm:$0xff]
    %v162 = vld [vmem:[#allocation6 + $0x70] sm:$0xff]
    %v163 = vld [vmem:[#allocation6 + $0x78] sm:$0xff]
    %v164 = vld [vmem:[#allocation6 + $0x80] sm:$0xff]
    %v165 = vld [vmem:[#allocation6 + $0x88] sm:$0xff]
    %v166 = vld [vmem:[#allocation6 + $0x90] sm:$0xff]
    %v167 = vld [vmem:[#allocation6 + $0x98] sm:$0xff]
    %v168 = vld [vmem:[#allocation6 + $0xa0] sm:$0xff]
    %v169 = vld [vmem:[#allocation6 + $0xa8] sm:$0xff]
    %v170 = vld [vmem:[#allocation6 + $0xb0] sm:$0xff]
    %v171 = vld [vmem:[#allocation6 + $0xb8] sm:$0xff]
    %v172 = vld [vmem:[#allocation6 + $0xc0] sm:$0xff]
    %v173 = vld [vmem:[#allocation6 + $0xc8] sm:$0xff]
    %v174 = vld [vmem:[#allocation6 + $0xd0] sm:$0xff]
    %v175 = vld [vmem:[#allocation6 + $0xd8] sm:$0xff]
    %v176 = vld [vmem:[#allocation6 + $0xe0] sm:$0xff]
    %v177 = vld [vmem:[#allocation6 + $0xe8] sm:$0xff]
    %v178 = vld [vmem:[#allocation6 + $0xf0] sm:$0xff]
    %v179 = vld [vmem:[#allocation6 + $0xf8] sm:$0xff]
    %v180 = vld [vmem:[#allocation6 + $0x100] sm:$0x1]
    %v181 = vlaneseq
    %v182 = vshrl.u32 %v181, 7
    %v183 = vsub.s32 0, %v182
    %v184 = vrot.slane %v180, %v183
    %185 = vmatprep.subr.mxu0 0.0
    %186 = vmatpush1.msra.mxu0 %v163
    %187 = vmatprep.subr.mxu0 0.0
    %188 = vmatpush1.msra.mxu0 %v162
    %189 = vmatprep.subr.mxu0 0.0
    %190 = vmatpush1.msra.mxu0 %v161
    %191 = vmatprep.subr.mxu0 0.0
    %192 = vmatpush1.msra.mxu0 %v160
    %193 = vmatprep.subr.mxu0 0.0
    %194 = vmatpush1.msra.mxu0 %v159
    %195 = vmatprep.subr.mxu0 0.0
    %196 = vmatpush1.msra.mxu0 %v158
    %197 = vmatprep.subr.mxu0 0.0
    %198 = vmatpush1.msra.mxu0 %v157
    %199 = vmatprep.subr.mxu0 0.0
    %200 = vmatpush1.msra.mxu0 %v156
    %201 = vmatprep.subr.mxu0 0.0
    %202 = vmatpush1.msra.mxu0 %v155
    %203 = vmatprep.subr.mxu0 0.0
    %204 = vmatpush1.msra.mxu0 %v154
    %205 = vmatprep.subr.mxu0 0.0
    %206 = vmatpush1.msra.mxu0 %v153
    %207 = vmatprep.subr.mxu0 0.0
    %208 = vmatpush1.msra.mxu0 %v152
    %209 = vmatprep.subr.mxu0 0.0
    %210 = vmatpush1.msra.mxu0 %v151
    %211 = vmatprep.subr.mxu0 0.0
    %212 = vmatpush1.msra.mxu0 %v150
    %213 = vmatprep.subr.mxu0 0.0
    %214 = vmatpush1.msra.mxu0 %v149
    %215 = vmatprep.subr.mxu0 0.0
    %216 = vmatpush1.msra.mxu0 %v148
    %217 = vmatprep.subr.mxu0 0.0
    %218 = vmatpush2.msra.mxu0 %v179
    %219 = vmatprep.subr.mxu0 0.0
    %220 = vmatpush2.msra.mxu0 %v178
    %221 = vmatprep.subr.mxu0 0.0
    %222 = vmatpush2.msra.mxu0 %v177
    %223 = vmatprep.subr.mxu0 0.0
    %224 = vmatpush2.msra.mxu0 %v176
    %225 = vmatprep.subr.mxu0 0.0
    %226 = vmatpush2.msra.mxu0 %v175
    %227 = vmatprep.subr.mxu0 0.0
    %228 = vmatpush2.msra.mxu0 %v174
    %229 = vmatprep.subr.mxu0 0.0
    %230 = vmatpush2.msra.mxu0 %v173
    %231 = vmatprep.subr.mxu0 0.0
    %232 = vmatpush2.msra.mxu0 %v172
    %233 = vmatprep.subr.mxu0 0.0
    %234 = vmatpush2.msra.mxu0 %v171
    %235 = vmatprep.subr.mxu0 0.0
    %236 = vmatpush2.msra.mxu0 %v170
    %237 = vmatprep.subr.mxu0 0.0
    %238 = vmatpush2.msra.mxu0 %v169
    %239 = vmatprep.subr.mxu0 0.0
    %240 = vmatpush2.msra.mxu0 %v168
    %241 = vmatprep.subr.mxu0 0.0
    %242 = vmatpush2.msra.mxu0 %v167
    %243 = vmatprep.subr.mxu0 0.0
    %244 = vmatpush2.msra.mxu0 %v166
    %245 = vmatprep.subr.mxu0 0.0
    %246 = vmatpush2.msra.mxu0 %v165
    %247 = vmatprep.subr.mxu0 0.0
    %248 = vmatpush2.msra.mxu0 %v164
    %249 = vmatprep.mubr.f32.mxu0 %v147
    %250 = vmatmul.mubr.f32.gmra.mxu0 %v146
    %v251 = vpop.f32.mrf.mxu0
    %v252 = vadd.f32 %v184, %v251
    %v253 = vpop.f32.mrf.mxu0
    %254 = vdwg.mxu0
    %v255 = vlaneseq
    %v256 = vand.u32 %v255, 127
    %vm257 = vcmp.eq.s32.totalorder %v256, 4
    %v258 = vsel %vm257, -1e+30, %v252
    %259 = vmax.xlane.f32.xlu0 %v258
    %v260 = vpop.xlane.xlu0 %259
    %v261 = vsub.f32 %v258, %v260
    %v262 = vmul.f32 %v261, 1.442695
    %v263 = vpow.pop %v262
    %264 = vadd.xlane.f32.xlu0 %v263
    %v265 = vpop.xlane.xlu0 %264
    %v266 = vrcp.pop %v265
    %v267 = vmul.f32 %v265, %v266
    %v268 = vsub.f32 2.0, %v267
    %v269 = vmul.f32 %v266, %v268
    %v270 = vmul.f32 %v263, %v269
    %v271 = vsel %vm257, %v252, %v270
    %v272 = vpack.c.bf16 %v271, %v271
    %273 = vst [vmem:[%s3] sm:$0xf] %v272
    // Predicated region
    $region26: #{actor_critic_forward.1} parent=1 // pred_check
      _
    $region27: #{actor_critic_forward.1} parent=1 // pred_check_branch
      %275 = sbr.rel (0) target = $region29
    $region28: #{actor_critic_forward.1} parent=1 // pred_region
      _
    $region29: #{actor_critic_forward.1} parent=1 // pred_fallthru
      _
    // Predicated region
    $region30: #{actor_critic_forward.1} parent=1 // pred_check
      _
    $region31: #{actor_critic_forward.1} parent=1 // pred_check_branch
      %277 = sbr.rel (0) target = $region33
    $region32: #{actor_critic_forward.1} parent=1 // pred_region
      _
    $region33: #{actor_critic_forward.1} parent=1 // pred_fallthru
      _
    %278 = vsyncpa [#allocation3], 1
    %279 = vsyncpa [#allocation5], 1

</llo_original>
